<compile_context>
chip_gen: v5e
topology: v5e:2x2
jax: 0.10.0
libtpu: 0.0.40
codegen_flags: <defaults>
</compile_context>

<pallas_src>
import functools

import jax
import jax.numpy as jnp
from jax.experimental import pallas as pl
from jax.experimental.pallas import tpu as pltpu


def _kernel_attention_kernel(nls_ref, qa_ref, ka_ref, v_ref, w_ref, o_ref,
                             acc_ref, *, num_heads, value_dim, normalise,
                             exp_in_bf16):
    mi = pl.program_id(2)

    @pl.when(mi == 0)
    def _init():
        acc_ref[...] = jnp.zeros_like(acc_ref)

    # Squared distances (+ folded key mask) for this tile via one f32 MXU matmul:
    #   q_aug [Bt,TQ,Da] . k_aug^T [Bt,Da,TM] = -2 q.k + |q|^2 + |k|^2 + mask*BIG
    d2 = jnp.einsum('bqc,bcm->bqm', qa_ref[...], ka_ref[...],
                    preferred_element_type=jnp.float32)          # [Bt,TQ,TM]
    d2 = jnp.maximum(d2, 0.0)                                    # masked ~ +BIG

    def head_body(h, carry):
        # gaussian basis exp(-(d/ls)^2) == exp(d2 * (-1/ls^2)); scalar from SMEM.
        arg = d2 * nls_ref[h]
        if exp_in_bf16:                       # v6e/v7x: bf16 EUP/VPU path
            s = jnp.exp(arg.astype(jnp.bfloat16))
        else:                                 # v5e-safe: f32 elementwise/exp
            s = jnp.exp(arg)
        # numerator + normalisation denominator in one bf16 MXU matmul
        # (values carry an appended ones column -> last lane is sum_m s).
        sv = jnp.einsum('bqm,bmv->bqv', s.astype(v_ref.dtype), v_ref[h],
                        preferred_element_type=jnp.float32)      # [Bt,TQ,V+1]
        acc_ref[h] += sv
        return carry

    # fori_loop (not a static unroll) caps the live set to one head's score tile.
    jax.lax.fori_loop(0, num_heads, head_body, 0)

    @pl.when(mi == pl.num_programs(2) - 1)
    def _finalize():
        V = value_dim
        bt, tq = acc_ref.shape[1], acc_ref.shape[2]
        rows = bt * tq
        op = o_ref.shape[-1]
        out_acc = jnp.zeros((rows, op), jnp.float32)
        for h in range(num_heads):            # small static loop, tiny per-head state
            a = acc_ref[h]                    # [Bt,TQ,V+1] f32
            att = a[:, :, :V]
            if normalise:
                denom = a[:, :, V:V + 1] + 1e-5
                att = att * pl.reciprocal(denom, approx=True)    # s >= 0 => |s| = s
            # per-head projection accumulation: one big-LHS matmul, no flat scratch.
            att2d = att.reshape(rows, V).astype(w_ref.dtype)
            out_acc = out_acc + jnp.dot(att2d, w_ref[h],
                                        preferred_element_type=jnp.float32)
        o_ref[...] = out_acc.reshape(o_ref.shape).astype(o_ref.dtype)


def _pick_tile(dim, target, multiple=1):
    """Largest divisor of `dim` that is <= target and a multiple of `multiple`.
    Falls back to the full dimension (always a legal block)."""
    for t in range(min(dim, target), 0, -1):
        if dim % t == 0 and t % multiple == 0:
            return t
    return dim


def kernel_attention(query, key, values, masked_elements, lengthscales, w_out_t,
                     normalise_kernel_values=True,
                     batch_tile=4, q_tile=256, m_tile=512,
                     exp_in_bf16=False,
                     vmem_limit_bytes=32 * 1024 * 1024):
    B, Q, D = query.shape
    _, M, H, V = values.shape
    HV, O = w_out_t.shape
    assert HV == H * V
    assert lengthscales.shape == (H,)

    f32, bf16 = jnp.float32, jnp.bfloat16
    BIG = 1e30  # masked keys -> d2 ~ BIG -> exp(-BIG/ls^2) == 0

    query = query.astype(f32)
    key = key.astype(f32)

    # Distances are shift-invariant: centre the coordinates to reduce f32
    # cancellation in the |q|^2 + |k|^2 - 2 q.k expansion.
    center = 0.5 * (jnp.mean(query, axis=1, keepdims=True)
                    + jnp.mean(key, axis=1, keepdims=True))
    query = query - center
    key = key - center

    neg_inv_ls2 = -1.0 / (lengthscales.astype(f32) ** 2)                    # [H]

    # Augmented coordinates (distance + mask folded into one matmul), padded to a
    # sublane-aligned feature width.
    Da = D + 2
    Da_pad = ((Da + 7) // 8) * 8
    q_sq = jnp.sum(query * query, axis=-1, keepdims=True)                   # [B,Q,1]
    k_sq = jnp.sum(key * key, axis=-1, keepdims=True)                       # [B,M,1]
    penalty = masked_elements.astype(f32)[..., None] * BIG                  # [B,M,1]
    q_aug = jnp.concatenate(
        [query, q_sq, jnp.ones_like(q_sq),
         jnp.zeros((B, Q, Da_pad - Da), f32)], axis=-1)                     # [B,Q,Da_pad]
    k_feat = jnp.concatenate(
        [-2.0 * key, jnp.ones_like(k_sq), k_sq + penalty,
         jnp.zeros((B, M, Da_pad - Da), f32)], axis=-1)                     # [B,M,Da_pad]
    k_aug_t = jnp.transpose(k_feat, (0, 2, 1))                              # [B,Da_pad,M]

    # Values: head-major + appended ones column (MXU-computed denominator), bf16.
    v_t = jnp.transpose(values, (2, 0, 1, 3)).astype(f32)                   # [H,B,M,V]
    v_aug = jnp.concatenate([v_t, jnp.ones((H, B, M, 1), f32)], axis=-1)
    v_aug = v_aug.astype(bf16)                                              # [H,B,M,V+1]
    Vp = V + 1

    # Per-head projection weight, lane-dense (multiple-of-128) padded output width.
    Op = ((O + 127) // 128) * 128
    w_r = w_out_t.astype(f32).reshape(H, V, O)
    w_pad = jnp.pad(w_r, ((0, 0), (0, 0), (0, Op - O))).astype(bf16)        # [H,V,Op]

    Bt = _pick_tile(B, batch_tile, 1)
    TQ = _pick_tile(Q, q_tile, 8)
    # k_aug^T has M on lanes and bf16 values pack two rows/sublane: keep TM a
    # multiple of 128, else fall back to the full M (always legal).
    TM = _pick_tile(M, m_tile, 128)

    # v7x has 2 TensorCores: keep >= 2 iterations on the parallel axes if possible.
    if (B // Bt) * (Q // TQ) < 2:
        if B // Bt < 2 and Bt > 1:
            Bt = _pick_tile(B, max(1, Bt // 2), 1)
        if (B // Bt) * (Q // TQ) < 2 and Q // TQ < 2 and TQ > 8:
            TQ = _pick_tile(Q, max(8, TQ // 2), 8)

    grid = (B // Bt, Q // TQ, M // TM)

    kernel = functools.partial(
        _kernel_attention_kernel, num_heads=H, value_dim=V,
        normalise=normalise_kernel_values, exp_in_bf16=exp_in_bf16)

    out_pad = pl.pallas_call(
        kernel,
        out_shape=jax.ShapeDtypeStruct((B, Q, Op), bf16),
        grid=grid,
        in_specs=[
            pl.BlockSpec(memory_space=pltpu.MemorySpace.SMEM),               # -1/ls^2 [H]
            pl.BlockSpec((Bt, TQ, Da_pad), lambda b, q, m: (b, q, 0)),       # q_aug
            pl.BlockSpec((Bt, Da_pad, TM), lambda b, q, m: (b, 0, m)),       # k_aug^T
            pl.BlockSpec((H, Bt, TM, Vp), lambda b, q, m: (0, b, m, 0)),     # values
            pl.BlockSpec((H, V, Op), lambda b, q, m: (0, 0, 0)),             # W per head
        ],
        out_specs=pl.BlockSpec((Bt, TQ, Op), lambda b, q, m: (b, q, 0)),
        scratch_shapes=[
            pltpu.VMEM((H, Bt, TQ, Vp), f32),   # per-head streaming accumulator
        ],
        compiler_params=pltpu.CompilerParams(
            dimension_semantics=("parallel", "parallel", "arbitrary"),
            vmem_limit_bytes=vmem_limit_bytes),
    )(neg_inv_ls2, q_aug, k_aug_t, v_aug, w_pad)

    return out_pad[:, :, :O].astype(f32)


def _reference(query, key, values, masked_elements, lengthscales, w_out_t,
               normalise=True):
    """Pure-JAX reference mirroring the PyTorch forward."""
    diff = query[:, :, None, :] - key[:, None, :, :]
    dist = jnp.sqrt(jnp.maximum(jnp.sum(diff * diff, axis=-1), 0.0))        # [B,Q,M]
    sd = dist[:, None, :, :] / lengthscales[None, :, None, None]            # [B,H,Q,M]
    s = jnp.exp(-sd ** 2)
    s = jnp.where(masked_elements[:, None, None, :], 0.0, s)
    if normalise:
        s = s / (jnp.sum(jnp.abs(s), axis=-1, keepdims=True) + 1e-5)
    v_t = jnp.transpose(values, (0, 2, 1, 3))                               # [B,H,M,V]
    att = jnp.einsum('bhqm,bhmv->bhqv', s, v_t)                             # [B,H,Q,V]
    flat = jnp.transpose(att, (0, 2, 1, 3)).reshape(att.shape[0], att.shape[2], -1)
    return flat @ w_out_t


if __name__ == "__main__":
    B, Q, M, D = 2, 32, 256, 4
    lengthscales = jnp.array([0.5, 1.0, 2.0, 4.0], dtype=jnp.float32)
    H = lengthscales.shape[0]
    V, O = 8, 32
    normalise_kernel_values = True

    key0 = jax.random.PRNGKey(0)
    k_q, k_k, k_v, k_w = jax.random.split(key0, 4)
    query_positions = jax.random.normal(k_q, (B, Q, D), dtype=jnp.float32)
    key_positions = jax.random.normal(k_k, (B, M, D), dtype=jnp.float32)
    values = jax.random.normal(k_v, (B, M, H, V), dtype=jnp.float32)
    # batch 0: nothing masked; batch 1: last 5 memory elements masked.
    masked_elements = jnp.arange(M)[None, :] >= jnp.array([[M], [M - 5]])

    # nn.Linear(value_dim * num_heads, output_dim, bias=False) weight: [O, H*V]
    w_out = jax.random.normal(k_w, (O, H * V), dtype=jnp.float32) * 0.1
    w_out_t = w_out.T                                                       # [H*V, O]

    # Small explicit tiles so the demo exercises the full (batch, Q, M-stream)
    # grid: grid = (2, 2, 2) with streamed normalisation over the M axis.
    out = kernel_attention(query_positions, key_positions, values, masked_elements,
                           lengthscales, w_out_t,
                           normalise_kernel_values=normalise_kernel_values,
                           batch_tile=1, q_tile=16, m_tile=128)
    out = jax.block_until_ready(out)

    ref = _reference(query_positions, key_positions, values, masked_elements,
                     lengthscales, w_out_t, normalise=normalise_kernel_values)
    assert out.shape == (B, Q, O)
    max_err = float(jnp.max(jnp.abs(out - ref)))
    # bf16 MXU inputs (f32 accumulation), bf16 output store + approx reciprocal.
    assert jnp.allclose(out, ref, atol=3e-2, rtol=3e-2), max_err

    print("KERNEL_OK")
</pallas_src>

<mosaic_0001>
module attributes {stable_mosaic.version = 11 : i64} {
  func.func @_kernel_attention_kernel(%arg0: i32, %arg1: i32, %arg2: i32, %arg3: memref<4xf32, #tpu.memory_space<smem>>, %arg4: memref<1x16x8xf32, #tpu.memory_space<vmem>>, %arg5: memref<1x8x128xf32, #tpu.memory_space<vmem>>, %arg6: memref<4x1x128x9xbf16, #tpu.memory_space<vmem>>, %arg7: memref<4x8x128xbf16, #tpu.memory_space<vmem>>, %arg8: memref<1x16x128xbf16, #tpu.memory_space<vmem>>, %arg9: memref<4x1x16x9xf32, #tpu.memory_space<vmem>>) attributes {dimension_semantics = [#tpu.dimension_semantics<parallel>, #tpu.dimension_semantics<parallel>, #tpu.dimension_semantics<arbitrary>], iteration_bounds = array<i64: 2, 2, 2>, scalar_prefetch = 0 : i64, scratch_operands = 1 : i64, tpu.core_type = #tpu.core_type<tc>, window_params = [{transform_indices = @transform_0, window_bounds = array<i64: 4>}, {transform_indices = @transform_1, window_bounds = array<i64: 1, 16, 8>}, {transform_indices = @transform_2, window_bounds = array<i64: 1, 8, 128>}, {transform_indices = @transform_3, window_bounds = array<i64: 4, 1, 128, 9>}, {pipeline_mode = #tpu.pipeline_mode<synchronous>, transform_indices = @transform_4, window_bounds = array<i64: 4, 8, 128>}, {transform_indices = @transform_5, window_bounds = array<i64: 1, 16, 128>}]} {
    %c0_i32 = arith.constant 0 : i32
    %0 = arith.cmpi eq, %arg2, %c0_i32 : i32
    %1 = arith.extui %0 : i1 to i32
    %c0_i32_0 = arith.constant 0 : i32
    %2 = arith.cmpi ne, %1, %c0_i32_0 : i32
    scf.if %2 {
      %cst_11 = arith.constant 0.000000e+00 : f32
      %12 = vector.broadcast %cst_11 : f32 to vector<4x1x16x9xf32>
      %c0_12 = arith.constant 0 : index
      %c0_13 = arith.constant 0 : index
      %c0_14 = arith.constant 0 : index
      %c0_15 = arith.constant 0 : index
      %13 = vector.load %arg9[%c0_12, %c0_13, %c0_14, %c0_15] : memref<4x1x16x9xf32, #tpu.memory_space<vmem>>, vector<4x1x16x9xf32>
      tpu.vector_store %arg9[%c0_12, %c0_13, %c0_14, %c0_15], %12 {strides = array<i32>} : memref<4x1x16x9xf32, #tpu.memory_space<vmem>>, vector<4x1x16x9xf32>,
    } else {
    }
    %c0 = arith.constant 0 : index
    %c0_1 = arith.constant 0 : index
    %c0_2 = arith.constant 0 : index
    %3 = vector.load %arg4[%c0, %c0_1, %c0_2] : memref<1x16x8xf32, #tpu.memory_space<vmem>>, vector<1x16x8xf32>
    %c0_3 = arith.constant 0 : index
    %c0_4 = arith.constant 0 : index
    %c0_5 = arith.constant 0 : index
    %4 = vector.load %arg5[%c0_3, %c0_4, %c0_5] : memref<1x8x128xf32, #tpu.memory_space<vmem>>, vector<1x8x128xf32>
    "tpu.trace_start"() <{level = 10 : i32, message = "bqc,bcm->bqm"}> : () -> ()
    %cst = arith.constant dense<0.000000e+00> : vector<1x16x128xf32>
    %5 = tpu.matmul %3, %4, %cst {dimension_numbers = #tpu.dot_dimension_numbers<[2], [1], [1], [2], [0, 0, 0, 1, 1, 2], [0], [0]>} : vector<1x16x8xf32>, vector<1x8x128xf32>, vector<1x16x128xf32> -> vector<1x16x128xf32>
    "tpu.trace_stop"() : () -> ()
    %cst_6 = arith.constant 0.000000e+00 : f32
    %6 = vector.broadcast %cst_6 : f32 to vector<1x16x128xf32>
    %7 = arith.maximumf %5, %6 : vector<1x16x128xf32>
    %c0_i32_7 = arith.constant 0 : i32
    %c4_i32 = arith.constant 4 : i32
    %8 = arith.addi %c0_i32_7, %c4_i32 : i32
    %c1_i32 = arith.constant 1 : i32
    scf.for %arg10 = %c0_i32_7 to %8 step %c1_i32  : i32 {
      %12 = arith.index_cast %arg10 : i32 to index
      %13 = memref.load %arg3[%12] : memref<4xf32, #tpu.memory_space<smem>>
      %14 = vector.broadcast %13 : f32 to vector<1x16x128xf32>
      %15 = arith.mulf %7, %14 : vector<1x16x128xf32>
      %16 = math.exp %15 : vector<1x16x128xf32>
      %17 = arith.truncf %16 : vector<1x16x128xf32> to vector<1x16x128xbf16>
      %18 = arith.index_cast %arg10 : i32 to index
      %c0_11 = arith.constant 0 : index
      %c0_12 = arith.constant 0 : index
      %c0_13 = arith.constant 0 : index
      %19 = vector.load %arg6[%18, %c0_11, %c0_12, %c0_13] : memref<4x1x128x9xbf16, #tpu.memory_space<vmem>>, vector<1x1x128x9xbf16>
      %20 = vector.shape_cast %19 : vector<1x1x128x9xbf16> to vector<1x128x9xbf16>
      "tpu.trace_start"() <{level = 10 : i32, message = "bqm,bmv->bqv"}> : () -> ()
      %cst_14 = arith.constant dense<0.000000e+00> : vector<1x16x9xf32>
      %21 = tpu.matmul %17, %20, %cst_14 {dimension_numbers = #tpu.dot_dimension_numbers<[2], [1], [1], [2], [0, 0, 0, 1, 1, 2], [0], [0]>} : vector<1x16x128xbf16>, vector<1x128x9xbf16>, vector<1x16x9xf32> -> vector<1x16x9xf32>
      "tpu.trace_stop"() : () -> ()
      %22 = arith.index_cast %arg10 : i32 to index
      %c0_15 = arith.constant 0 : index
      %c0_16 = arith.constant 0 : index
      %c0_17 = arith.constant 0 : index
      %23 = vector.load %arg9[%22, %c0_15, %c0_16, %c0_17] : memref<4x1x16x9xf32, #tpu.memory_space<vmem>>, vector<1x1x16x9xf32>
      %24 = vector.shape_cast %23 : vector<1x1x16x9xf32> to vector<1x16x9xf32>
      %25 = arith.addf %24, %21 : vector<1x16x9xf32>
      %26 = arith.index_cast %arg10 : i32 to index
      %c0_18 = arith.constant 0 : index
      %c0_19 = arith.constant 0 : index
      %c0_20 = arith.constant 0 : index
      %27 = vector.load %arg9[%26, %c0_18, %c0_19, %c0_20] : memref<4x1x16x9xf32, #tpu.memory_space<vmem>>, vector<1x1x16x9xf32>
      %28 = vector.shape_cast %27 : vector<1x1x16x9xf32> to vector<1x16x9xf32>
      %29 = vector.shape_cast %25 : vector<1x16x9xf32> to vector<1x1x16x9xf32>
      tpu.vector_store %arg9[%26, %c0_18, %c0_19, %c0_20], %29 {strides = array<i32>} : memref<4x1x16x9xf32, #tpu.memory_space<vmem>>, vector<1x1x16x9xf32>,
    }
    %c4_i32_8 = arith.constant 4 : i32
    %c1_i32_9 = arith.constant 1 : i32
    %9 = arith.cmpi eq, %arg2, %c1_i32_9 : i32
    %10 = arith.extui %9 : i1 to i32
    %c0_i32_10 = arith.constant 0 : i32
    %11 = arith.cmpi ne, %10, %c0_i32_10 : i32
    scf.if %11 {
      %cst_11 = arith.constant 0.000000e+00 : f32
      %12 = vector.broadcast %cst_11 : f32 to vector<16x128xf32>
      %c0_12 = arith.constant 0 : index
      %c0_13 = arith.constant 0 : index
      %c0_14 = arith.constant 0 : index
      %c0_15 = arith.constant 0 : index
      %13 = vector.load %arg9[%c0_12, %c0_13, %c0_14, %c0_15] : memref<4x1x16x9xf32, #tpu.memory_space<vmem>>, vector<1x1x16x9xf32>
      %14 = vector.shape_cast %13 : vector<1x1x16x9xf32> to vector<1x16x9xf32>
      %15 = vector.extract_strided_slice %14 {offsets = [0, 0, 0], sizes = [1, 16, 8], strides = [1, 1, 1]} : vector<1x16x9xf32> to vector<1x16x8xf32>
      %16 = vector.extract_strided_slice %14 {offsets = [0, 0, 8], sizes = [1, 16, 1], strides = [1, 1, 1]} : vector<1x16x9xf32> to vector<1x16x1xf32>
      %cst_16 = arith.constant 9.99999974E-6 : f32
      %17 = vector.broadcast %cst_16 : f32 to vector<1x16x1xf32>
      %18 = arith.addf %16, %17 : vector<1x16x1xf32>
      %19 = tpu.reciprocal %18 {approx = true} : vector<1x16x1xf32> -> vector<1x16x1xf32>
      %20 = vector.broadcast %19 : vector<1x16x1xf32> to vector<1x16x8xf32>
      %21 = arith.mulf %15, %20 : vector<1x16x8xf32>
      %22 = vector.shape_cast %21 : vector<1x16x8xf32> to vector<16x8xf32>
      %23 = arith.truncf %22 : vector<16x8xf32> to vector<16x8xbf16>
      %c0_17 = arith.constant 0 : index
      %c0_18 = arith.constant 0 : index
      %c0_19 = arith.constant 0 : index
      %24 = vector.load %arg7[%c0_17, %c0_18, %c0_19] : memref<4x8x128xbf16, #tpu.memory_space<vmem>>, vector<1x8x128xbf16>
      %25 = vector.shape_cast %24 : vector<1x8x128xbf16> to vector<8x128xbf16>
      %cst_20 = arith.constant dense<0.000000e+00> : vector<16x128xf32>
      %26 = tpu.matmul %23, %25, %cst_20 {dimension_numbers = #tpu.dot_dimension_numbers<[1], [0], [0], [1], [0, 0, 1, 1], [], []>} : vector<16x8xbf16>, vector<8x128xbf16>, vector<16x128xf32> -> vector<16x128xf32>
      %27 = arith.addf %12, %26 : vector<16x128xf32>
      %c1 = arith.constant 1 : index
      %c0_21 = arith.constant 0 : index
      %c0_22 = arith.constant 0 : index
      %c0_23 = arith.constant 0 : index
      %28 = vector.load %arg9[%c1, %c0_21, %c0_22, %c0_23] : memref<4x1x16x9xf32, #tpu.memory_space<vmem>>, vector<1x1x16x9xf32>
      %29 = vector.shape_cast %28 : vector<1x1x16x9xf32> to vector<1x16x9xf32>
      %30 = vector.extract_strided_slice %29 {offsets = [0, 0, 0], sizes = [1, 16, 8], strides = [1, 1, 1]} : vector<1x16x9xf32> to vector<1x16x8xf32>
      %31 = vector.extract_strided_slice %29 {offsets = [0, 0, 8], sizes = [1, 16, 1], strides = [1, 1, 1]} : vector<1x16x9xf32> to vector<1x16x1xf32>
      %cst_24 = arith.constant 9.99999974E-6 : f32
      %32 = vector.broadcast %cst_24 : f32 to vector<1x16x1xf32>
      %33 = arith.addf %31, %32 : vector<1x16x1xf32>
      %34 = tpu.reciprocal %33 {approx = true} : vector<1x16x1xf32> -> vector<1x16x1xf32>
      %35 = vector.broadcast %34 : vector<1x16x1xf32> to vector<1x16x8xf32>
      %36 = arith.mulf %30, %35 : vector<1x16x8xf32>
      %37 = vector.shape_cast %36 : vector<1x16x8xf32> to vector<16x8xf32>
      %38 = arith.truncf %37 : vector<16x8xf32> to vector<16x8xbf16>
      %c1_25 = arith.constant 1 : index
      %c0_26 = arith.constant 0 : index
      %c0_27 = arith.constant 0 : index
      %39 = vector.load %arg7[%c1_25, %c0_26, %c0_27] : memref<4x8x128xbf16, #tpu.memory_space<vmem>>, vector<1x8x128xbf16>
      %40 = vector.shape_cast %39 : vector<1x8x128xbf16> to vector<8x128xbf16>
      %cst_28 = arith.constant dense<0.000000e+00> : vector<16x128xf32>
      %41 = tpu.matmul %38, %40, %cst_28 {dimension_numbers = #tpu.dot_dimension_numbers<[1], [0], [0], [1], [0, 0, 1, 1], [], []>} : vector<16x8xbf16>, vector<8x128xbf16>, vector<16x128xf32> -> vector<16x128xf32>
      %42 = arith.addf %27, %41 : vector<16x128xf32>
      %c2 = arith.constant 2 : index
      %c0_29 = arith.constant 0 : index
      %c0_30 = arith.constant 0 : index
      %c0_31 = arith.constant 0 : index
      %43 = vector.load %arg9[%c2, %c0_29, %c0_30, %c0_31] : memref<4x1x16x9xf32, #tpu.memory_space<vmem>>, vector<1x1x16x9xf32>
      %44 = vector.shape_cast %43 : vector<1x1x16x9xf32> to vector<1x16x9xf32>
      %45 = vector.extract_strided_slice %44 {offsets = [0, 0, 0], sizes = [1, 16, 8], strides = [1, 1, 1]} : vector<1x16x9xf32> to vector<1x16x8xf32>
      %46 = vector.extract_strided_slice %44 {offsets = [0, 0, 8], sizes = [1, 16, 1], strides = [1, 1, 1]} : vector<1x16x9xf32> to vector<1x16x1xf32>
      %cst_32 = arith.constant 9.99999974E-6 : f32
      %47 = vector.broadcast %cst_32 : f32 to vector<1x16x1xf32>
      %48 = arith.addf %46, %47 : vector<1x16x1xf32>
      %49 = tpu.reciprocal %48 {approx = true} : vector<1x16x1xf32> -> vector<1x16x1xf32>
      %50 = vector.broadcast %49 : vector<1x16x1xf32> to vector<1x16x8xf32>
      %51 = arith.mulf %45, %50 : vector<1x16x8xf32>
      %52 = vector.shape_cast %51 : vector<1x16x8xf32> to vector<16x8xf32>
      %53 = arith.truncf %52 : vector<16x8xf32> to vector<16x8xbf16>
      %c2_33 = arith.constant 2 : index
      %c0_34 = arith.constant 0 : index
      %c0_35 = arith.constant 0 : index
      %54 = vector.load %arg7[%c2_33, %c0_34, %c0_35] : memref<4x8x128xbf16, #tpu.memory_space<vmem>>, vector<1x8x128xbf16>
      %55 = vector.shape_cast %54 : vector<1x8x128xbf16> to vector<8x128xbf16>
      %cst_36 = arith.constant dense<0.000000e+00> : vector<16x128xf32>
      %56 = tpu.matmul %53, %55, %cst_36 {dimension_numbers = #tpu.dot_dimension_numbers<[1], [0], [0], [1], [0, 0, 1, 1], [], []>} : vector<16x8xbf16>, vector<8x128xbf16>, vector<16x128xf32> -> vector<16x128xf32>
      %57 = arith.addf %42, %56 : vector<16x128xf32>
      %c3 = arith.constant 3 : index
      %c0_37 = arith.constant 0 : index
      %c0_38 = arith.constant 0 : index
      %c0_39 = arith.constant 0 : index
      %58 = vector.load %arg9[%c3, %c0_37, %c0_38, %c0_39] : memref<4x1x16x9xf32, #tpu.memory_space<vmem>>, vector<1x1x16x9xf32>
      %59 = vector.shape_cast %58 : vector<1x1x16x9xf32> to vector<1x16x9xf32>
      %60 = vector.extract_strided_slice %59 {offsets = [0, 0, 0], sizes = [1, 16, 8], strides = [1, 1, 1]} : vector<1x16x9xf32> to vector<1x16x8xf32>
      %61 = vector.extract_strided_slice %59 {offsets = [0, 0, 8], sizes = [1, 16, 1], strides = [1, 1, 1]} : vector<1x16x9xf32> to vector<1x16x1xf32>
      %cst_40 = arith.constant 9.99999974E-6 : f32
      %62 = vector.broadcast %cst_40 : f32 to vector<1x16x1xf32>
      %63 = arith.addf %61, %62 : vector<1x16x1xf32>
      %64 = tpu.reciprocal %63 {approx = true} : vector<1x16x1xf32> -> vector<1x16x1xf32>
      %65 = vector.broadcast %64 : vector<1x16x1xf32> to vector<1x16x8xf32>
      %66 = arith.mulf %60, %65 : vector<1x16x8xf32>
      %67 = vector.shape_cast %66 : vector<1x16x8xf32> to vector<16x8xf32>
      %68 = arith.truncf %67 : vector<16x8xf32> to vector<16x8xbf16>
      %c3_41 = arith.constant 3 : index
      %c0_42 = arith.constant 0 : index
      %c0_43 = arith.constant 0 : index
      %69 = vector.load %arg7[%c3_41, %c0_42, %c0_43] : memref<4x8x128xbf16, #tpu.memory_space<vmem>>, vector<1x8x128xbf16>
      %70 = vector.shape_cast %69 : vector<1x8x128xbf16> to vector<8x128xbf16>
      %cst_44 = arith.constant dense<0.000000e+00> : vector<16x128xf32>
      %71 = tpu.matmul %68, %70, %cst_44 {dimension_numbers = #tpu.dot_dimension_numbers<[1], [0], [0], [1], [0, 0, 1, 1], [], []>} : vector<16x8xbf16>, vector<8x128xbf16>, vector<16x128xf32> -> vector<16x128xf32>
      %72 = arith.addf %57, %71 : vector<16x128xf32>
      %73 = vector.shape_cast %72 : vector<16x128xf32> to vector<1x16x128xf32>
      %74 = arith.truncf %73 : vector<1x16x128xf32> to vector<1x16x128xbf16>
      %c0_45 = arith.constant 0 : index
      %c0_46 = arith.constant 0 : index
      %c0_47 = arith.constant 0 : index
      %75 = vector.load %arg8[%c0_45, %c0_46, %c0_47] : memref<1x16x128xbf16, #tpu.memory_space<vmem>>, vector<1x16x128xbf16>
      tpu.vector_store %arg8[%c0_45, %c0_46, %c0_47], %74 {strides = array<i32>} : memref<1x16x128xbf16, #tpu.memory_space<vmem>>, vector<1x16x128xbf16>,
    } else {
    }
    return
  }
  func.func @transform_0(%arg0: i32, %arg1: i32, %arg2: i32) -> i32 {
    %c0_i32 = arith.constant 0 : i32
    %c0_i32_0 = arith.constant 0 : i32
    return %c0_i32 : i32
  }
  func.func @transform_1(%arg0: i32, %arg1: i32, %arg2: i32) -> (i32, i32, i32) {
    %c0_i32 = arith.constant 0 : i32
    %c0_i32_0 = arith.constant 0 : i32
    return %arg0, %arg1, %c0_i32 : i32, i32, i32
  }
  func.func @transform_2(%arg0: i32, %arg1: i32, %arg2: i32) -> (i32, i32, i32) {
    %c0_i32 = arith.constant 0 : i32
    %c0_i32_0 = arith.constant 0 : i32
    return %arg0, %c0_i32, %arg2 : i32, i32, i32
  }
  func.func @transform_3(%arg0: i32, %arg1: i32, %arg2: i32) -> (i32, i32, i32, i32) {
    %c0_i32 = arith.constant 0 : i32
    %c0_i32_0 = arith.constant 0 : i32
    %c0_i32_1 = arith.constant 0 : i32
    return %c0_i32, %arg0, %arg2, %c0_i32_0 : i32, i32, i32, i32
  }
  func.func @transform_4(%arg0: i32, %arg1: i32, %arg2: i32) -> (i32, i32, i32) {
    %c0_i32 = arith.constant 0 : i32
    %c0_i32_0 = arith.constant 0 : i32
    %c0_i32_1 = arith.constant 0 : i32
    %c0_i32_2 = arith.constant 0 : i32
    return %c0_i32, %c0_i32_0, %c0_i32_1 : i32, i32, i32
  }
  func.func @transform_5(%arg0: i32, %arg1: i32, %arg2: i32) -> (i32, i32, i32) {
    %c0_i32 = arith.constant 0 : i32
    %c0_i32_0 = arith.constant 0 : i32
    return %arg0, %arg1, %c0_i32 : i32, i32, i32
  }
}

</mosaic_0001>

<llo_original>
// kernel: tpu_custom_call.1
$region0: #{tpu_custom_call.1}
  #allocation0 [shape = 'u32[]', space=smem, size = 0x4, offset = 0x4, fixed_abs, tag = 'smem constant byte address 0x4 - core index']
  #allocation1 [shape = 'u32[72,128]{1,0:T(1,128)}', space=vmem, size = 0x9000, scoped, tag = 'internal scratch']
  #allocation2 [shape = 'f32[4,1,16,9]{3,2,1,0:T(8,128)}', space=vmem, size = 0x8000, scoped, tag = 'scratch operand']
  %s0 = inlined_call_operand.vmem [shape: f32[4], index: 0, kind: input, shape index: {}]
  %s1 = inlined_call_operand.vmem [shape: f32[2,32,8], index: 1, kind: input, shape index: {}]
  %s2 = inlined_call_operand.vmem [shape: f32[2,8,256], index: 2, kind: input, shape index: {}]
  %s3 = inlined_call_operand.vmem [shape: bf16[4,2,256,9], index: 3, kind: input, shape index: {}]
  %s4 = inlined_call_operand.vmem [shape: bf16[4,8,128], index: 4, kind: input, shape index: {}]
  %s5 = inlined_call_operand.hbm [shape: bf16[2,32,128], index: 5, kind: output, shape index: {}]
  %s6 = sld [smem:[#allocation0]]
  $region113: #{tpu_custom_call.1} parent=0
    _
  %s8 = ssub.s32 1, %s6
  %s9 = scalar_select 0, %s8, %s6
  $region1: #{tpu_custom_call.1} parent=0
    #allocation3 [shape = 'u8[512]{0}', space=smem, size = 0x200, scoped, tag = 'input window, operand 0, single buffered']
    #allocation4 [shape = 's32[2]{0}', space=sflag, size = 0x8, scoped, tag = 'scoped memory for tpu_custom_call.1']
    #allocation5 [shape = 's32[2]{0}', space=sflag, size = 0x8, scoped, tag = 'scoped memory for tpu_custom_call.1']
    #allocation6 [shape = 'u8[262144]{0}', space=vmem, size = 0x40000, scoped, tag = 'input window, operand 3']
    #allocation7 [shape = 'u8[8192]{0}', space=vmem, size = 0x2000, scoped, tag = 'output window, operand 0']
    %10 = vsyncpa [#allocation5], 0
    %11 = vsyncpa [#allocation4], 0
    %s12 = scalar_lea.sflag [#allocation4], 1
    %13 = vsyncpa %s12, 0
    loop: start=0, step=1, limit=10
    $region2: #{tpu_custom_call.1} parent=1 // loop_pre_header
      _
    $region3: #{tpu_custom_call.1} parent=1 // loop_header
      %s15 = sphi 0, %s19
      %p16 = scmp.ge.s32.totalorder %s15, 10
      %s22 = sphi 0, %s41
      %s23 = sphi 0, %s37
      %s24 = sphi 0, %s33
      %s25 = sphi 0, %s22
      %s26 = sphi 0, %s23
      %s27 = sphi 0, %s24
      %s28 = sphi 0, %s25
      %s29 = sphi 0, %s26
      %s30 = sphi 0, %s27
      %s42 = sphi 0, %s42
      %s44 = sphi 0, %s42
      %s45 = sphi 0, %s44
      %s59 = sphi 0, %s45
      %s67 = sphi 0, %s69
      %s70 = sphi 0, %s67
      %s71 = sphi 0, %s70
      %s87 = sphi 0, %s71
      %s95 = sphi 0, %s97
      %s98 = sphi 0, %s95
      %s99 = sphi 0, %s98
      %s115 = sphi 0, %s99
      %s123 = sphi 0, %s125
      %s126 = sphi 0, %s123
      %s127 = sphi 0, %s126
      %s143 = sphi 0, %s127
      %s147 = sphi 0, %s147
      %s149 = sphi 0, %s147
      %s150 = sphi 0, %s149
      %s164 = sphi 0, %s150
      %s172 = sphi 0, %s174
      %s175 = sphi 0, %s172
      %s176 = sphi 0, %s175
      %s192 = sphi 0, %s176
    $region4: #{tpu_custom_call.1} parent=1 // loop_header_branch
      %18 = sbr.rel (%p16) target = $region8
    $region5: #{tpu_custom_call.1} parent=1 // loop_body
      %s20 = ssub.s32 %s15, 1
      %s21 = ssub.s32 %s15, 2
      %s31 = sadd.s32 1, %s24
      %p32 = scmp.ge.s32.totalorder %s31, 2
      %s33 = scalar_select %p32, 0, %s31
      %s34 = sadd.s32 1, %s23
      %s35 = scalar_select %p32, %s34, %s23
      %p36 = scmp.ge.s32.totalorder %s35, 2
      %s37 = scalar_select %p36, 0, %s35
      %s38 = sadd.s32 1, %s22
      %s39 = scalar_select %p36, %s38, %s22
      %p40 = scmp.ge.s32.totalorder %s39, 2
      %s41 = scalar_select %p40, 0, %s39
      %s43 = sadd.s32 %s42, 1
      %p46 = scmp.eq.s32.totalorder %s15, 7
      %p47 = scmp.ne.s32.totalorder %s42, %s44
      %p48 = scmp.eq.s32.totalorder %s15, 0
      %p49 = por %p47, %p48
      %p50 = scmp.ne.s32.totalorder %s42, %s44
      %p51 = scmp.eq.s32.totalorder %s20, 7
      %p52 = por %p50, %p51
      %p53 = scmp.ne.s32.totalorder %s44, %s45
      %p54 = scmp.eq.s32.totalorder %s20, 0
      %p55 = por %p53, %p54
      %p56 = scmp.ne.s32.totalorder %s44, %s45
      %p57 = scmp.eq.s32.totalorder %s21, 7
      %p58 = por %p56, %p57
      %p60 = scmp.ne.s32.totalorder %s45, %s59
      %p61 = scmp.eq.s32.totalorder %s21, 0
      %p62 = por %p60, %p61
      %s63 = ssub.s32 %s22, %s41
      %s64 = ssub.s32 %s23, %s37
      %s65 = sor.u32 %s63, %s64
      %p66 = scmp.eq.s32.totalorder %s65, 0
      %s68 = sadd.s32 %s67, 1
      %s69 = scalar_select %p66, %s67, %s68
      %p72 = pneg %p66
      %p73 = scmp.eq.s32.totalorder %s15, 7
      %p74 = por %p72, %p73
      %p75 = scmp.ne.s32.totalorder %s67, %s70
      %p76 = scmp.eq.s32.totalorder %s15, 0
      %p77 = por %p75, %p76
      %p78 = scmp.ne.s32.totalorder %s67, %s70
      %p79 = scmp.eq.s32.totalorder %s20, 7
      %p80 = por %p78, %p79
      %p81 = scmp.ne.s32.totalorder %s70, %s71
      %p82 = scmp.eq.s32.totalorder %s20, 0
      %p83 = por %p81, %p82
      %p84 = scmp.ne.s32.totalorder %s70, %s71
      %p85 = scmp.eq.s32.totalorder %s21, 7
      %p86 = por %p84, %p85
      %p88 = scmp.ne.s32.totalorder %s71, %s87
      %p89 = scmp.eq.s32.totalorder %s21, 0
      %p90 = por %p88, %p89
      %s91 = ssub.s32 %s22, %s41
      %s92 = ssub.s32 %s24, %s33
      %s93 = sor.u32 %s91, %s92
      %p94 = scmp.eq.s32.totalorder %s93, 0
      %s96 = sadd.s32 %s95, 1
      %s97 = scalar_select %p94, %s95, %s96
      %p100 = pneg %p94
      %p101 = scmp.eq.s32.totalorder %s15, 7
      %p102 = por %p100, %p101
      %p103 = scmp.ne.s32.totalorder %s95, %s98
      %p104 = scmp.eq.s32.totalorder %s15, 0
      %p105 = por %p103, %p104
      %p106 = scmp.ne.s32.totalorder %s95, %s98
      %p107 = scmp.eq.s32.totalorder %s20, 7
      %p108 = por %p106, %p107
      %p109 = scmp.ne.s32.totalorder %s98, %s99
      %p110 = scmp.eq.s32.totalorder %s20, 0
      %p111 = por %p109, %p110
      %p112 = scmp.ne.s32.totalorder %s98, %s99
      %p113 = scmp.eq.s32.totalorder %s21, 7
      %p114 = por %p112, %p113
      %p116 = scmp.ne.s32.totalorder %s99, %s115
      %p117 = scmp.eq.s32.totalorder %s21, 0
      %p118 = por %p116, %p117
      %s119 = ssub.s32 %s22, %s41
      %s120 = ssub.s32 %s24, %s33
      %s121 = sor.u32 %s119, %s120
      %p122 = scmp.eq.s32.totalorder %s121, 0
      %s124 = sadd.s32 %s123, 1
      %s125 = scalar_select %p122, %s123, %s124
      %p128 = pneg %p122
      %p129 = scmp.eq.s32.totalorder %s15, 7
      %p130 = por %p128, %p129
      %p131 = scmp.ne.s32.totalorder %s123, %s126
      %p132 = scmp.eq.s32.totalorder %s15, 0
      %p133 = por %p131, %p132
      %p134 = scmp.ne.s32.totalorder %s123, %s126
      %p135 = scmp.eq.s32.totalorder %s20, 7
      %p136 = por %p134, %p135
      %p137 = scmp.ne.s32.totalorder %s126, %s127
      %p138 = scmp.eq.s32.totalorder %s20, 0
      %p139 = por %p137, %p138
      %p140 = scmp.ne.s32.totalorder %s126, %s127
      %p141 = scmp.eq.s32.totalorder %s21, 7
      %p142 = por %p140, %p141
      %p144 = scmp.ne.s32.totalorder %s127, %s143
      %p145 = scmp.eq.s32.totalorder %s21, 0
      %p146 = por %p144, %p145
      %s148 = sadd.s32 %s147, 1
      %p151 = scmp.eq.s32.totalorder %s15, 7
      %p152 = scmp.ne.s32.totalorder %s147, %s149
      %p153 = scmp.eq.s32.totalorder %s15, 0
      %p154 = por %p152, %p153
      %p155 = scmp.ne.s32.totalorder %s147, %s149
      %p156 = scmp.eq.s32.totalorder %s20, 7
      %p157 = por %p155, %p156
      %p158 = scmp.ne.s32.totalorder %s149, %s150
      %p159 = scmp.eq.s32.totalorder %s20, 0
      %p160 = por %p158, %p159
      %p161 = scmp.ne.s32.totalorder %s149, %s150
      %p162 = scmp.eq.s32.totalorder %s21, 7
      %p163 = por %p161, %p162
      %p165 = scmp.ne.s32.totalorder %s150, %s164
      %p166 = scmp.eq.s32.totalorder %s21, 0
      %p167 = por %p165, %p166
      %s168 = ssub.s32 %s22, %s41
      %s169 = ssub.s32 %s23, %s37
      %s170 = sor.u32 %s168, %s169
      %p171 = scmp.eq.s32.totalorder %s170, 0
      %s173 = sadd.s32 %s172, 1
      %s174 = scalar_select %p171, %s172, %s173
      %p177 = pneg %p171
      %p178 = scmp.eq.s32.totalorder %s15, 7
      %p179 = por %p177, %p178
      %p180 = scmp.ne.s32.totalorder %s172, %s175
      %p181 = scmp.eq.s32.totalorder %s15, 0
      %p182 = por %p180, %p181
      %p183 = scmp.ne.s32.totalorder %s172, %s175
      %p184 = scmp.eq.s32.totalorder %s20, 7
      %p185 = por %p183, %p184
      %p186 = scmp.ne.s32.totalorder %s175, %s176
      %p187 = scmp.eq.s32.totalorder %s20, 0
      %p188 = por %p186, %p187
      %p189 = scmp.ne.s32.totalorder %s175, %s176
      %p190 = scmp.eq.s32.totalorder %s21, 7
      %p191 = por %p189, %p190
      %p193 = scmp.ne.s32.totalorder %s176, %s192
      %p194 = scmp.eq.s32.totalorder %s21, 0
      %p195 = por %p193, %p194
      %p196 = scmp.le.s32.totalorder 1, %s15
      %p197 = scmp.lt.s32.totalorder %s15, 9
      %p198 = pnand %p196, %p197
      %p199 = pneg %p198
      // Predicated region
      $region9: #{tpu_custom_call.1} parent=5 // pred_check
        _
      $region10: #{tpu_custom_call.1} parent=5 // pred_check_branch
        %201 = sbr.rel (%p198) target = $region12
      $region11: #{tpu_custom_call.1} parent=5 // pred_region
        %s202 = ssub.s32 %s15, 1
        // Predicated region
        $region13: #{tpu_custom_call.1} parent=11 // pred_check
          %p203 = pneg %p55
        $region14: #{tpu_custom_call.1} parent=11 // pred_check_branch
          %205 = sbr.rel (%p203) target = $region16
        $region15: #{tpu_custom_call.1} parent=11 // pred_region
          %207 = vsyncadd [#allocation5], 0
          %s209 = sshll.u32 %s0, 4
          %s210 = int_to_ptr.vmem [resolvable:$true] %s209
          %212 = dma.vmem_to_smem %s210, 16, [#allocation3], [#allocation5]
        $region16: #{tpu_custom_call.1} parent=11 // pred_fallthru
          _
        // Predicated region
        $region17: #{tpu_custom_call.1} parent=11 // pred_check
          %p213 = pneg %p160
        $region18: #{tpu_custom_call.1} parent=11 // pred_check_branch
          %215 = sbr.rel (%p213) target = $region20
        $region19: #{tpu_custom_call.1} parent=11 // pred_region
          _
        $region20: #{tpu_custom_call.1} parent=11 // pred_fallthru
          _
      $region12: #{tpu_custom_call.1} parent=5 // pred_fallthru
        _
      %p216 = scmp.lt.s32.totalorder %s15, 8
      // Predicated region
      $region21: #{tpu_custom_call.1} parent=5 // pred_check
        %p217 = pneg %p216
      $region22: #{tpu_custom_call.1} parent=5 // pred_check_branch
        %219 = sbr.rel (%p217) target = $region24
      $region23: #{tpu_custom_call.1} parent=5 // pred_region
        // Predicated region
        $region25: #{tpu_custom_call.1} parent=23 // pred_check
          %p220 = pneg %p77
        $region26: #{tpu_custom_call.1} parent=23 // pred_check_branch
          %222 = sbr.rel (%p220) target = $region28
        $region27: #{tpu_custom_call.1} parent=23 // pred_region
          %s223 = smul.u32 2, %s23
          %p224 = scmp.lt.s32.totalorder %s22, 1
          %s225 = scalar_select %p224, %s22, 1
          %p226 = scmp.lt.s32.totalorder %s223, 3
          %s227 = scalar_select %p226, %s223, 3
          %s228 = smul.addr %s225, 4
          %s229 = sadd.s32 %s227, %s228
          %s230 = smul.addr %s229, 8
          %s231 = scalar_lea.vmem %s1, %s230
          %s232 = smul.u32 2, %s23
        $region28: #{tpu_custom_call.1} parent=23 // pred_fallthru
          _
        // Predicated region
        $region29: #{tpu_custom_call.1} parent=23 // pred_check
          %p233 = pneg %p105
        $region30: #{tpu_custom_call.1} parent=23 // pred_check_branch
          %235 = sbr.rel (%p233) target = $region32
        $region31: #{tpu_custom_call.1} parent=23 // pred_region
          %p236 = scmp.lt.s32.totalorder %s22, 1
          %s237 = scalar_select %p236, %s22, 1
          %p238 = scmp.lt.s32.totalorder %s24, 1
          %s239 = scalar_select %p238, %s24, 1
          %s240 = smul.addr %s237, 2
          %s241 = sadd.s32 %s239, %s240
          %s242 = smul.addr %s241, 8
          %s243 = scalar_lea.vmem %s2, %s242
        $region32: #{tpu_custom_call.1} parent=23 // pred_fallthru
          _
        // Predicated region
        $region33: #{tpu_custom_call.1} parent=23 // pred_check
          %p244 = pneg %p133
        $region34: #{tpu_custom_call.1} parent=23 // pred_check_branch
          %246 = sbr.rel (%p244) target = $region36
        $region35: #{tpu_custom_call.1} parent=23 // pred_region
          %s247 = sand.u32 %s123, 1
          %s248 = sand.u32 %s123, 1
          %s249 = smul.addr %s248, 256
          %s250 = scalar_lea.vmem [#allocation6], %s249
          %s251 = smul.u32 16, %s24
          %s252 = smul.addr %s22, 32
          %s253 = sadd.s32 %s251, %s252
          %s254 = smul.addr %s253, 4
          %s255 = scalar_lea.vmem %s3, %s254
          // Predicated region
          $region37: #{tpu_custom_call.1} parent=35 // pred_check
            _
          $region38: #{tpu_custom_call.1} parent=35 // pred_check_branch
            %257 = sbr.rel (0) target = $region40
          $region39: #{tpu_custom_call.1} parent=35 // pred_region
            // Predicated region
            $region41: #{tpu_custom_call.1} parent=39 // pred_check
              _
            $region42: #{tpu_custom_call.1} parent=39 // pred_check_branch
              %259 = sbr.rel target = $region44
            $region43: #{tpu_custom_call.1} parent=39 // pred_region
              // Predicated region
              $region56: #{tpu_custom_call.1} parent=43 // pred_check
                _
              $region57: #{tpu_custom_call.1} parent=43 // pred_check_branch
                %401 = sbr.rel (0) target = $region59
              $region58: #{tpu_custom_call.1} parent=43 // pred_region
                loop: start=0, step=1, limit=1
                $region60: #{tpu_custom_call.1} parent=58 // loop_pre_header
                  _
                $region61: #{tpu_custom_call.1} parent=58 // loop_header
                  %s403 = sphi 0, %s407
                  %p404 = scmp.ge.s32.totalorder %s403, 1
                  %s408 = sphi %s255, %s255
                  %s409 = sphi %s250, %s250
                $region62: #{tpu_custom_call.1} parent=58 // loop_header_branch
                  %406 = sbr.rel (%p404) target = $region66
                $region63: #{tpu_custom_call.1} parent=58 // loop_body
                  _
                $region64: #{tpu_custom_call.1} parent=58 // loop_footer
                  %s407 = sadd.s32 1, %s403
                $region65: #{tpu_custom_call.1} parent=58 // loop_footer_branch
                  %402 = sbr.rel target = $region61
                $region66: #{tpu_custom_call.1} parent=58 // loop_exit
                  _
                %s411 = ssub.s32 16, 1
                loop: start=0, step=1, limit=1
                $region67: #{tpu_custom_call.1} parent=58 // loop_pre_header
                  _
                $region68: #{tpu_custom_call.1} parent=58 // loop_header
                  %s413 = sphi 0, %s417
                  %p414 = scmp.ge.s32.totalorder %s413, 1
                  %s418 = sphi %s255, %s255
                  %s419 = sphi %s250, %s250
                $region69: #{tpu_custom_call.1} parent=58 // loop_header_branch
                  %416 = sbr.rel (%p414) target = $region73
                $region70: #{tpu_custom_call.1} parent=58 // loop_body
                  %v420 = vld [vmem:[%s418] sm:%s411]
                  %421 = vst [vmem:[%s419] sm:%s411] %v420
                  %v422 = vld [vmem:[%s418 + $0x4] sm:%s411]
                  %423 = vst [vmem:[%s419 + $0x4] sm:%s411] %v422
                  %v424 = vld [vmem:[%s418 + $0x8] sm:%s411]
                  %425 = vst [vmem:[%s419 + $0x8] sm:%s411] %v424
                  %v426 = vld [vmem:[%s418 + $0xc] sm:%s411]
                  %427 = vst [vmem:[%s419 + $0xc] sm:%s411] %v426
                  %v428 = vld [vmem:[%s418 + $0x10] sm:%s411]
                  %429 = vst [vmem:[%s419 + $0x10] sm:%s411] %v428
                  %v430 = vld [vmem:[%s418 + $0x14] sm:%s411]
                  %431 = vst [vmem:[%s419 + $0x14] sm:%s411] %v430
                  %v432 = vld [vmem:[%s418 + $0x18] sm:%s411]
                  %433 = vst [vmem:[%s419 + $0x18] sm:%s411] %v432
                  %v434 = vld [vmem:[%s418 + $0x1c] sm:%s411]
                  %435 = vst [vmem:[%s419 + $0x1c] sm:%s411] %v434
                  %v436 = vld [vmem:[%s418 + $0x20] sm:%s411]
                  %437 = vst [vmem:[%s419 + $0x20] sm:%s411] %v436
                  %v438 = vld [vmem:[%s418 + $0x24] sm:%s411]
                  %439 = vst [vmem:[%s419 + $0x24] sm:%s411] %v438
                  %v440 = vld [vmem:[%s418 + $0x28] sm:%s411]
                  %441 = vst [vmem:[%s419 + $0x28] sm:%s411] %v440
                  %v442 = vld [vmem:[%s418 + $0x2c] sm:%s411]
                  %443 = vst [vmem:[%s419 + $0x2c] sm:%s411] %v442
                  %v444 = vld [vmem:[%s418 + $0x30] sm:%s411]
                  %445 = vst [vmem:[%s419 + $0x30] sm:%s411] %v444
                  %v446 = vld [vmem:[%s418 + $0x34] sm:%s411]
                  %447 = vst [vmem:[%s419 + $0x34] sm:%s411] %v446
                  %v448 = vld [vmem:[%s418 + $0x38] sm:%s411]
                  %449 = vst [vmem:[%s419 + $0x38] sm:%s411] %v448
                  %v450 = vld [vmem:[%s418 + $0x3c] sm:%s411]
                  %451 = vst [vmem:[%s419 + $0x3c] sm:%s411] %v450
                  %v452 = vld [vmem:[%s418 + $0x100] sm:%s411]
                  %453 = vst [vmem:[%s419 + $0x40] sm:%s411] %v452
                  %v454 = vld [vmem:[%s418 + $0x104] sm:%s411]
                  %455 = vst [vmem:[%s419 + $0x44] sm:%s411] %v454
                  %v456 = vld [vmem:[%s418 + $0x108] sm:%s411]
                  %457 = vst [vmem:[%s419 + $0x48] sm:%s411] %v456
                  %v458 = vld [vmem:[%s418 + $0x10c] sm:%s411]
                  %459 = vst [vmem:[%s419 + $0x4c] sm:%s411] %v458
                  %v460 = vld [vmem:[%s418 + $0x110] sm:%s411]
                  %461 = vst [vmem:[%s419 + $0x50] sm:%s411] %v460
                  %v462 = vld [vmem:[%s418 + $0x114] sm:%s411]
                  %463 = vst [vmem:[%s419 + $0x54] sm:%s411] %v462
                  %v464 = vld [vmem:[%s418 + $0x118] sm:%s411]
                  %465 = vst [vmem:[%s419 + $0x58] sm:%s411] %v464
                  %v466 = vld [vmem:[%s418 + $0x11c] sm:%s411]
                  %467 = vst [vmem:[%s419 + $0x5c] sm:%s411] %v466
                  %v468 = vld [vmem:[%s418 + $0x120] sm:%s411]
                  %469 = vst [vmem:[%s419 + $0x60] sm:%s411] %v468
                  %v470 = vld [vmem:[%s418 + $0x124] sm:%s411]
                  %471 = vst [vmem:[%s419 + $0x64] sm:%s411] %v470
                  %v472 = vld [vmem:[%s418 + $0x128] sm:%s411]
                  %473 = vst [vmem:[%s419 + $0x68] sm:%s411] %v472
                  %v474 = vld [vmem:[%s418 + $0x12c] sm:%s411]
                  %475 = vst [vmem:[%s419 + $0x6c] sm:%s411] %v474
                  %v476 = vld [vmem:[%s418 + $0x130] sm:%s411]
                  %477 = vst [vmem:[%s419 + $0x70] sm:%s411] %v476
                  %v478 = vld [vmem:[%s418 + $0x134] sm:%s411]
                  %479 = vst [vmem:[%s419 + $0x74] sm:%s411] %v478
                  %v480 = vld [vmem:[%s418 + $0x138] sm:%s411]
                  %481 = vst [vmem:[%s419 + $0x78] sm:%s411] %v480
                  %v482 = vld [vmem:[%s418 + $0x13c] sm:%s411]
                  %483 = vst [vmem:[%s419 + $0x7c] sm:%s411] %v482
                  %v484 = vld [vmem:[%s418 + $0x200] sm:%s411]
                  %485 = vst [vmem:[%s419 + $0x80] sm:%s411] %v484
                  %v486 = vld [vmem:[%s418 + $0x204] sm:%s411]
                  %487 = vst [vmem:[%s419 + $0x84] sm:%s411] %v486
                  %v488 = vld [vmem:[%s418 + $0x208] sm:%s411]
                  %489 = vst [vmem:[%s419 + $0x88] sm:%s411] %v488
                  %v490 = vld [vmem:[%s418 + $0x20c] sm:%s411]
                  %491 = vst [vmem:[%s419 + $0x8c] sm:%s411] %v490
                  %v492 = vld [vmem:[%s418 + $0x210] sm:%s411]
                  %493 = vst [vmem:[%s419 + $0x90] sm:%s411] %v492
                  %v494 = vld [vmem:[%s418 + $0x214] sm:%s411]
                  %495 = vst [vmem:[%s419 + $0x94] sm:%s411] %v494
                  %v496 = vld [vmem:[%s418 + $0x218] sm:%s411]
                  %497 = vst [vmem:[%s419 + $0x98] sm:%s411] %v496
                  %v498 = vld [vmem:[%s418 + $0x21c] sm:%s411]
                  %499 = vst [vmem:[%s419 + $0x9c] sm:%s411] %v498
                  %v500 = vld [vmem:[%s418 + $0x220] sm:%s411]
                  %501 = vst [vmem:[%s419 + $0xa0] sm:%s411] %v500
                  %v502 = vld [vmem:[%s418 + $0x224] sm:%s411]
                  %503 = vst [vmem:[%s419 + $0xa4] sm:%s411] %v502
                  %v504 = vld [vmem:[%s418 + $0x228] sm:%s411]
                  %505 = vst [vmem:[%s419 + $0xa8] sm:%s411] %v504
                  %v506 = vld [vmem:[%s418 + $0x22c] sm:%s411]
                  %507 = vst [vmem:[%s419 + $0xac] sm:%s411] %v506
                  %v508 = vld [vmem:[%s418 + $0x230] sm:%s411]
                  %509 = vst [vmem:[%s419 + $0xb0] sm:%s411] %v508
                  %v510 = vld [vmem:[%s418 + $0x234] sm:%s411]
                  %511 = vst [vmem:[%s419 + $0xb4] sm:%s411] %v510
                  %v512 = vld [vmem:[%s418 + $0x238] sm:%s411]
                  %513 = vst [vmem:[%s419 + $0xb8] sm:%s411] %v512
                  %v514 = vld [vmem:[%s418 + $0x23c] sm:%s411]
                  %515 = vst [vmem:[%s419 + $0xbc] sm:%s411] %v514
                  %v516 = vld [vmem:[%s418 + $0x300] sm:%s411]
                  %517 = vst [vmem:[%s419 + $0xc0] sm:%s411] %v516
                  %v518 = vld [vmem:[%s418 + $0x304] sm:%s411]
                  %519 = vst [vmem:[%s419 + $0xc4] sm:%s411] %v518
                  %v520 = vld [vmem:[%s418 + $0x308] sm:%s411]
                  %521 = vst [vmem:[%s419 + $0xc8] sm:%s411] %v520
                  %v522 = vld [vmem:[%s418 + $0x30c] sm:%s411]
                  %523 = vst [vmem:[%s419 + $0xcc] sm:%s411] %v522
                  %v524 = vld [vmem:[%s418 + $0x310] sm:%s411]
                  %525 = vst [vmem:[%s419 + $0xd0] sm:%s411] %v524
                  %v526 = vld [vmem:[%s418 + $0x314] sm:%s411]
                  %527 = vst [vmem:[%s419 + $0xd4] sm:%s411] %v526
                  %v528 = vld [vmem:[%s418 + $0x318] sm:%s411]
                  %529 = vst [vmem:[%s419 + $0xd8] sm:%s411] %v528
                  %v530 = vld [vmem:[%s418 + $0x31c] sm:%s411]
                  %531 = vst [vmem:[%s419 + $0xdc] sm:%s411] %v530
                  %v532 = vld [vmem:[%s418 + $0x320] sm:%s411]
                  %533 = vst [vmem:[%s419 + $0xe0] sm:%s411] %v532
                  %v534 = vld [vmem:[%s418 + $0x324] sm:%s411]
                  %535 = vst [vmem:[%s419 + $0xe4] sm:%s411] %v534
                  %v536 = vld [vmem:[%s418 + $0x328] sm:%s411]
                  %537 = vst [vmem:[%s419 + $0xe8] sm:%s411] %v536
                  %v538 = vld [vmem:[%s418 + $0x32c] sm:%s411]
                  %539 = vst [vmem:[%s419 + $0xec] sm:%s411] %v538
                  %v540 = vld [vmem:[%s418 + $0x330] sm:%s411]
                  %541 = vst [vmem:[%s419 + $0xf0] sm:%s411] %v540
                  %v542 = vld [vmem:[%s418 + $0x334] sm:%s411]
                  %543 = vst [vmem:[%s419 + $0xf4] sm:%s411] %v542
                  %v544 = vld [vmem:[%s418 + $0x338] sm:%s411]
                  %545 = vst [vmem:[%s419 + $0xf8] sm:%s411] %v544
                  %v546 = vld [vmem:[%s418 + $0x33c] sm:%s411]
                  %547 = vst [vmem:[%s419 + $0xfc] sm:%s411] %v546
                $region71: #{tpu_custom_call.1} parent=58 // loop_footer
                  %s417 = sadd.s32 1, %s413
                $region72: #{tpu_custom_call.1} parent=58 // loop_footer_branch
                  %412 = sbr.rel target = $region68
                $region73: #{tpu_custom_call.1} parent=58 // loop_exit
                  _
              $region59: #{tpu_custom_call.1} parent=43 // pred_fallthru
                _
            $region44: #{tpu_custom_call.1} parent=39 // pred_fallthru
              _
            // Predicated region
            $region45: #{tpu_custom_call.1} parent=39 // pred_check
              _
            $region46: #{tpu_custom_call.1} parent=39 // pred_check_branch
              %261 = sbr.rel (0) target = $region48
            $region47: #{tpu_custom_call.1} parent=39 // pred_region
              %s263 = ssub.s32 16, 1
              loop: start=0, step=1, limit=1
              $region49: #{tpu_custom_call.1} parent=47 // loop_pre_header
                _
              $region50: #{tpu_custom_call.1} parent=47 // loop_header
                %s265 = sphi 0, %s269
                %p266 = scmp.ge.s32.totalorder %s265, 1
                %s270 = sphi %s255, %s255
                %s271 = sphi %s250, %s250
              $region51: #{tpu_custom_call.1} parent=47 // loop_header_branch
                %268 = sbr.rel (%p266) target = $region55
              $region52: #{tpu_custom_call.1} parent=47 // loop_body
                %v272 = vld [vmem:[%s270] sm:%s263]
                %273 = vst [vmem:[%s271] sm:%s263] %v272
                %v274 = vld [vmem:[%s270 + $0x4] sm:%s263]
                %275 = vst [vmem:[%s271 + $0x4] sm:%s263] %v274
                %v276 = vld [vmem:[%s270 + $0x8] sm:%s263]
                %277 = vst [vmem:[%s271 + $0x8] sm:%s263] %v276
                %v278 = vld [vmem:[%s270 + $0xc] sm:%s263]
                %279 = vst [vmem:[%s271 + $0xc] sm:%s263] %v278
                %v280 = vld [vmem:[%s270 + $0x10] sm:%s263]
                %281 = vst [vmem:[%s271 + $0x10] sm:%s263] %v280
                %v282 = vld [vmem:[%s270 + $0x14] sm:%s263]
                %283 = vst [vmem:[%s271 + $0x14] sm:%s263] %v282
                %v284 = vld [vmem:[%s270 + $0x18] sm:%s263]
                %285 = vst [vmem:[%s271 + $0x18] sm:%s263] %v284
                %v286 = vld [vmem:[%s270 + $0x1c] sm:%s263]
                %287 = vst [vmem:[%s271 + $0x1c] sm:%s263] %v286
                %v288 = vld [vmem:[%s270 + $0x20] sm:%s263]
                %289 = vst [vmem:[%s271 + $0x20] sm:%s263] %v288
                %v290 = vld [vmem:[%s270 + $0x24] sm:%s263]
                %291 = vst [vmem:[%s271 + $0x24] sm:%s263] %v290
                %v292 = vld [vmem:[%s270 + $0x28] sm:%s263]
                %293 = vst [vmem:[%s271 + $0x28] sm:%s263] %v292
                %v294 = vld [vmem:[%s270 + $0x2c] sm:%s263]
                %295 = vst [vmem:[%s271 + $0x2c] sm:%s263] %v294
                %v296 = vld [vmem:[%s270 + $0x30] sm:%s263]
                %297 = vst [vmem:[%s271 + $0x30] sm:%s263] %v296
                %v298 = vld [vmem:[%s270 + $0x34] sm:%s263]
                %299 = vst [vmem:[%s271 + $0x34] sm:%s263] %v298
                %v300 = vld [vmem:[%s270 + $0x38] sm:%s263]
                %301 = vst [vmem:[%s271 + $0x38] sm:%s263] %v300
                %v302 = vld [vmem:[%s270 + $0x3c] sm:%s263]
                %303 = vst [vmem:[%s271 + $0x3c] sm:%s263] %v302
                %v304 = vld [vmem:[%s270 + $0x100] sm:%s263]
                %305 = vst [vmem:[%s271 + $0x40] sm:%s263] %v304
                %v306 = vld [vmem:[%s270 + $0x104] sm:%s263]
                %307 = vst [vmem:[%s271 + $0x44] sm:%s263] %v306
                %v308 = vld [vmem:[%s270 + $0x108] sm:%s263]
                %309 = vst [vmem:[%s271 + $0x48] sm:%s263] %v308
                %v310 = vld [vmem:[%s270 + $0x10c] sm:%s263]
                %311 = vst [vmem:[%s271 + $0x4c] sm:%s263] %v310
                %v312 = vld [vmem:[%s270 + $0x110] sm:%s263]
                %313 = vst [vmem:[%s271 + $0x50] sm:%s263] %v312
                %v314 = vld [vmem:[%s270 + $0x114] sm:%s263]
                %315 = vst [vmem:[%s271 + $0x54] sm:%s263] %v314
                %v316 = vld [vmem:[%s270 + $0x118] sm:%s263]
                %317 = vst [vmem:[%s271 + $0x58] sm:%s263] %v316
                %v318 = vld [vmem:[%s270 + $0x11c] sm:%s263]
                %319 = vst [vmem:[%s271 + $0x5c] sm:%s263] %v318
                %v320 = vld [vmem:[%s270 + $0x120] sm:%s263]
                %321 = vst [vmem:[%s271 + $0x60] sm:%s263] %v320
                %v322 = vld [vmem:[%s270 + $0x124] sm:%s263]
                %323 = vst [vmem:[%s271 + $0x64] sm:%s263] %v322
                %v324 = vld [vmem:[%s270 + $0x128] sm:%s263]
                %325 = vst [vmem:[%s271 + $0x68] sm:%s263] %v324
                %v326 = vld [vmem:[%s270 + $0x12c] sm:%s263]
                %327 = vst [vmem:[%s271 + $0x6c] sm:%s263] %v326
                %v328 = vld [vmem:[%s270 + $0x130] sm:%s263]
                %329 = vst [vmem:[%s271 + $0x70] sm:%s263] %v328
                %v330 = vld [vmem:[%s270 + $0x134] sm:%s263]
                %331 = vst [vmem:[%s271 + $0x74] sm:%s263] %v330
                %v332 = vld [vmem:[%s270 + $0x138] sm:%s263]
                %333 = vst [vmem:[%s271 + $0x78] sm:%s263] %v332
                %v334 = vld [vmem:[%s270 + $0x13c] sm:%s263]
                %335 = vst [vmem:[%s271 + $0x7c] sm:%s263] %v334
                %v336 = vld [vmem:[%s270 + $0x200] sm:%s263]
                %337 = vst [vmem:[%s271 + $0x80] sm:%s263] %v336
                %v338 = vld [vmem:[%s270 + $0x204] sm:%s263]
                %339 = vst [vmem:[%s271 + $0x84] sm:%s263] %v338
                %v340 = vld [vmem:[%s270 + $0x208] sm:%s263]
                %341 = vst [vmem:[%s271 + $0x88] sm:%s263] %v340
                %v342 = vld [vmem:[%s270 + $0x20c] sm:%s263]
                %343 = vst [vmem:[%s271 + $0x8c] sm:%s263] %v342
                %v344 = vld [vmem:[%s270 + $0x210] sm:%s263]
                %345 = vst [vmem:[%s271 + $0x90] sm:%s263] %v344
                %v346 = vld [vmem:[%s270 + $0x214] sm:%s263]
                %347 = vst [vmem:[%s271 + $0x94] sm:%s263] %v346
                %v348 = vld [vmem:[%s270 + $0x218] sm:%s263]
                %349 = vst [vmem:[%s271 + $0x98] sm:%s263] %v348
                %v350 = vld [vmem:[%s270 + $0x21c] sm:%s263]
                %351 = vst [vmem:[%s271 + $0x9c] sm:%s263] %v350
                %v352 = vld [vmem:[%s270 + $0x220] sm:%s263]
                %353 = vst [vmem:[%s271 + $0xa0] sm:%s263] %v352
                %v354 = vld [vmem:[%s270 + $0x224] sm:%s263]
                %355 = vst [vmem:[%s271 + $0xa4] sm:%s263] %v354
                %v356 = vld [vmem:[%s270 + $0x228] sm:%s263]
                %357 = vst [vmem:[%s271 + $0xa8] sm:%s263] %v356
                %v358 = vld [vmem:[%s270 + $0x22c] sm:%s263]
                %359 = vst [vmem:[%s271 + $0xac] sm:%s263] %v358
                %v360 = vld [vmem:[%s270 + $0x230] sm:%s263]
                %361 = vst [vmem:[%s271 + $0xb0] sm:%s263] %v360
                %v362 = vld [vmem:[%s270 + $0x234] sm:%s263]
                %363 = vst [vmem:[%s271 + $0xb4] sm:%s263] %v362
                %v364 = vld [vmem:[%s270 + $0x238] sm:%s263]
                %365 = vst [vmem:[%s271 + $0xb8] sm:%s263] %v364
                %v366 = vld [vmem:[%s270 + $0x23c] sm:%s263]
                %367 = vst [vmem:[%s271 + $0xbc] sm:%s263] %v366
                %v368 = vld [vmem:[%s270 + $0x300] sm:%s263]
                %369 = vst [vmem:[%s271 + $0xc0] sm:%s263] %v368
                %v370 = vld [vmem:[%s270 + $0x304] sm:%s263]
                %371 = vst [vmem:[%s271 + $0xc4] sm:%s263] %v370
                %v372 = vld [vmem:[%s270 + $0x308] sm:%s263]
                %373 = vst [vmem:[%s271 + $0xc8] sm:%s263] %v372
                %v374 = vld [vmem:[%s270 + $0x30c] sm:%s263]
                %375 = vst [vmem:[%s271 + $0xcc] sm:%s263] %v374
                %v376 = vld [vmem:[%s270 + $0x310] sm:%s263]
                %377 = vst [vmem:[%s271 + $0xd0] sm:%s263] %v376
                %v378 = vld [vmem:[%s270 + $0x314] sm:%s263]
                %379 = vst [vmem:[%s271 + $0xd4] sm:%s263] %v378
                %v380 = vld [vmem:[%s270 + $0x318] sm:%s263]
                %381 = vst [vmem:[%s271 + $0xd8] sm:%s263] %v380
                %v382 = vld [vmem:[%s270 + $0x31c] sm:%s263]
                %383 = vst [vmem:[%s271 + $0xdc] sm:%s263] %v382
                %v384 = vld [vmem:[%s270 + $0x320] sm:%s263]
                %385 = vst [vmem:[%s271 + $0xe0] sm:%s263] %v384
                %v386 = vld [vmem:[%s270 + $0x324] sm:%s263]
                %387 = vst [vmem:[%s271 + $0xe4] sm:%s263] %v386
                %v388 = vld [vmem:[%s270 + $0x328] sm:%s263]
                %389 = vst [vmem:[%s271 + $0xe8] sm:%s263] %v388
                %v390 = vld [vmem:[%s270 + $0x32c] sm:%s263]
                %391 = vst [vmem:[%s271 + $0xec] sm:%s263] %v390
                %v392 = vld [vmem:[%s270 + $0x330] sm:%s263]
                %393 = vst [vmem:[%s271 + $0xf0] sm:%s263] %v392
                %v394 = vld [vmem:[%s270 + $0x334] sm:%s263]
                %395 = vst [vmem:[%s271 + $0xf4] sm:%s263] %v394
                %v396 = vld [vmem:[%s270 + $0x338] sm:%s263]
                %397 = vst [vmem:[%s271 + $0xf8] sm:%s263] %v396
                %v398 = vld [vmem:[%s270 + $0x33c] sm:%s263]
                %399 = vst [vmem:[%s271 + $0xfc] sm:%s263] %v398
              $region53: #{tpu_custom_call.1} parent=47 // loop_footer
                %s269 = sadd.s32 1, %s265
              $region54: #{tpu_custom_call.1} parent=47 // loop_footer_branch
                %264 = sbr.rel target = $region50
              $region55: #{tpu_custom_call.1} parent=47 // loop_exit
                _
            $region48: #{tpu_custom_call.1} parent=39 // pred_fallthru
              _
          $region40: #{tpu_custom_call.1} parent=35 // pred_fallthru
            _
          %548 = vnop
        $region36: #{tpu_custom_call.1} parent=23 // pred_fallthru
          _
      $region24: #{tpu_custom_call.1} parent=5 // pred_fallthru
        _
      %p549 = scmp.le.s32.totalorder 1, %s15
      %p550 = scmp.lt.s32.totalorder %s15, 9
      %p551 = pnand %p549, %p550
      %p552 = pneg %p551
      // Predicated region
      $region74: #{tpu_custom_call.1} parent=5 // pred_check
        _
      $region75: #{tpu_custom_call.1} parent=5 // pred_check_branch
        %554 = sbr.rel (%p551) target = $region77
      $region76: #{tpu_custom_call.1} parent=5 // pred_region
        %s555 = ssub.s32 %s15, 1
        // Predicated region
        $region78: #{tpu_custom_call.1} parent=76 // pred_check
          %p556 = pneg %p55
        $region79: #{tpu_custom_call.1} parent=76 // pred_check_branch
          %558 = sbr.rel (%p556) target = $region81
        $region80: #{tpu_custom_call.1} parent=76 // pred_region
          %560 = dma.done [#allocation5], 16
        $region81: #{tpu_custom_call.1} parent=76 // pred_fallthru
          _
        %s561 = sand.u32 %s126, 1
        %s562 = sand.u32 %s126, 1
        %s563 = smul.addr %s562, 256
        %s564 = scalar_lea.vmem [#allocation6], %s563
        // Predicated region
        $region82: #{tpu_custom_call.1} parent=76 // pred_check
          %p565 = pneg %p139
        $region83: #{tpu_custom_call.1} parent=76 // pred_check_branch
          %567 = sbr.rel (%p565) target = $region85
        $region84: #{tpu_custom_call.1} parent=76 // pred_region
          _
        $region85: #{tpu_custom_call.1} parent=76 // pred_fallthru
          _
        %568 = sfence
        %p569 = pneg %p55
        %p570 = pneg %p52
        %s571 = smul.u32 2, %s26
        %p572 = scmp.lt.s32.totalorder %s25, 1
        %s573 = scalar_select %p572, %s25, 1
        %p574 = scmp.lt.s32.totalorder %s571, 3
        %s575 = scalar_select %p574, %s571, 3
        %s576 = smul.addr %s573, 4
        %s577 = sadd.s32 %s575, %s576
        %s578 = smul.addr %s577, 8
        %s579 = scalar_lea.vmem %s1, %s578
        %p580 = pneg %p83
        %p581 = pneg %p80
        %p582 = scmp.lt.s32.totalorder %s25, 1
        %s583 = scalar_select %p582, %s25, 1
        %p584 = scmp.lt.s32.totalorder %s27, 1
        %s585 = scalar_select %p584, %s27, 1
        %s586 = smul.addr %s583, 2
        %s587 = sadd.s32 %s585, %s586
        %s588 = smul.addr %s587, 8
        %s589 = scalar_lea.vmem %s2, %s588
        %p590 = pneg %p111
        %p591 = pneg %p108
        %s592 = sand.u32 %s126, 1
        %s593 = sand.u32 %s126, 1
        %s594 = smul.addr %s593, 256
        %s595 = scalar_lea.vmem [#allocation6], %s594
        %p596 = pneg %p139
        %p597 = pneg %p136
        %p598 = pneg %p160
        %p599 = pneg %p157
        %p600 = pneg %p188
        %p601 = pneg %p185
        %s602 = sand.u32 %s175, 1
        %s603 = scalar_lea.sflag [#allocation4], %s602
        %s604 = sand.u32 %s175, 1
        %s605 = smul.addr %s604, 8
        %s606 = scalar_lea.vmem [#allocation7], %s605
        %s607 = smul.u32 2, %s26
        %p608 = scmp.lt.s32.totalorder %s25, 1
        %s609 = scalar_select %p608, %s25, 1
        %p610 = scmp.lt.s32.totalorder %s607, 3
        %s611 = scalar_select %p610, %s607, 3
        %s612 = smul.addr %s609, 4
        %s613 = sadd.s32 %s611, %s612
        %s614 = smul.addr %s613, 8
        %s615 = scalar_lea.vmem %s1, %s614
        %s616 = smul.u32 2, %s26
        %p617 = scmp.lt.s32.totalorder %s25, 1
        %s618 = scalar_select %p617, %s25, 1
        %p619 = scmp.lt.s32.totalorder %s27, 1
        %s620 = scalar_select %p619, %s27, 1
        %s621 = smul.addr %s618, 2
        %s622 = sadd.s32 %s620, %s621
        %s623 = smul.addr %s622, 8
        %s624 = scalar_lea.vmem %s2, %s623
        %s625 = smul.u32 16, %s27
        %s626 = smul.u32 2, %s26
        %p628 = scmp.eq.s32.totalorder %s27, 0
        // Predicated region
        $region86: #{tpu_custom_call.1} parent=76 // pred_check
          %p629 = pneg %p628
        $region87: #{tpu_custom_call.1} parent=76 // pred_check_branch
          %631 = sbr.rel (%p629) target = $region89
        $region88: #{tpu_custom_call.1} parent=76 // pred_region
          %vm632 = vcmask 72704
          %633 = vst.msk [vmem:[#allocation2] sm:$0xff] %vm632, 0.0
          %634 = vst.msk [vmem:[#allocation2 + $0x8] sm:$0xff] %vm632, 0.0
          %635 = vst.msk [vmem:[#allocation2 + $0x10] sm:$0xff] %vm632, 0.0
          %636 = vst.msk [vmem:[#allocation2 + $0x18] sm:$0xff] %vm632, 0.0
          %637 = vst.msk [vmem:[#allocation2 + $0x20] sm:$0xff] %vm632, 0.0
          %638 = vst.msk [vmem:[#allocation2 + $0x28] sm:$0xff] %vm632, 0.0
          %639 = vst.msk [vmem:[#allocation2 + $0x30] sm:$0xff] %vm632, 0.0
          %640 = vst.msk [vmem:[#allocation2 + $0x38] sm:$0xff] %vm632, 0.0
        $region89: #{tpu_custom_call.1} parent=76 // pred_fallthru
          _
        %v641 = vld [vmem:[%s615] sm:$0xff]
        %v642 = vld [vmem:[%s615 + $0x8] sm:$0xff]
        %v643 = vld [vmem:[%s624] sm:$0xff]
        %vm644 = vcmask 64512
        %v646 = vsel %vm644, %v641, 0
        %v649 = vsel %vm644, %v642, 0
        %651 = vmatpush.msra.mxu0 0.0
        %652 = vmatpush.msra.mxu0 0.0
        %653 = vmatpush.msra.mxu0 0.0
        %654 = vmatpush.msra.mxu0 0.0
        %655 = vmatpush.msra.mxu0 0.0
        %656 = vmatpush.msra.mxu0 0.0
        %657 = vmatpush.msra.mxu0 0.0
        %658 = vmatpush.msra.mxu0 0.0
        %659 = vmatpush.msra.mxu0 0.0
        %660 = vmatpush.msra.mxu0 0.0
        %661 = vmatpush.msra.mxu0 0.0
        %662 = vmatpush.msra.mxu0 0.0
        %663 = vmatpush.msra.mxu0 0.0
        %664 = vmatpush.msra.mxu0 0.0
        %665 = vmatpush.msra.mxu0 0.0
        %666 = vmatpush.msra.mxu0 %v643
        %667 = vmatmul.f32.gmra.mxu0 %v646
        %v668 = vpop.f32.mrf.mxu0
        %v669 = vadd.f32 0.0, %v668
        %670 = vmatmul.f32.gmra.mxu0 %v649
        %v671 = vpop.f32.mrf.mxu0
        %v672 = vadd.f32 0.0, %v671
        %673 = vdwg.mxu0
        %v674 = vmax.f32 %v669, 0.0
        %v675 = vmax.f32 %v672, 0.0
        loop: start=0, step=1, limit=4
        $region90: #{tpu_custom_call.1} parent=76 // loop_pre_header
          _
        $region91: #{tpu_custom_call.1} parent=76 // loop_header
          %s677 = sphi 0, %s681
          %p678 = scmp.ge.s32.totalorder %s677, 4
        $region92: #{tpu_custom_call.1} parent=76 // loop_header_branch
          %680 = sbr.rel (%p678) target = $region96
        $region93: #{tpu_custom_call.1} parent=76 // loop_body
          %s682 = sld [smem:[#allocation3 + %s677]]
          %v683 = vstv %s682
          %v684 = vmul.f32 %v674, %v683
          %v685 = vmul.f32 %v675, %v683
          %v686 = vmul.f32 %v684, 1.442695
          %v687 = vpow.pop %v686
          %v688 = vmul.f32 %v685, 1.442695
          %v689 = vpow.pop %v688
          %v690 = vpack.c.bf16 %v687, %v687
          %v691 = vpack.c.bf16 %v689, %v689
          %s692 = smul.u32 %s677, 16
          %s693 = smul.addr %s692, 4
          %s694 = scalar_lea.vmem %s564, %s693 [#allocation6]
          %v695 = vld [vmem:[%s694] sm:$0xf]
          %v696 = vld [vmem:[%s694 + $0x4] sm:$0xf]
          %v697 = vld [vmem:[%s694 + $0x8] sm:$0xf]
          %v698 = vld [vmem:[%s694 + $0xc] sm:$0xf]
          %v699 = vld [vmem:[%s694 + $0x10] sm:$0xf]
          %v700 = vld [vmem:[%s694 + $0x14] sm:$0xf]
          %v701 = vld [vmem:[%s694 + $0x18] sm:$0xf]
          %v702 = vld [vmem:[%s694 + $0x1c] sm:$0xf]
          %v703 = vld [vmem:[%s694 + $0x20] sm:$0xf]
          %v704 = vld [vmem:[%s694 + $0x24] sm:$0xf]
          %v705 = vld [vmem:[%s694 + $0x28] sm:$0xf]
          %v706 = vld [vmem:[%s694 + $0x2c] sm:$0xf]
          %v707 = vld [vmem:[%s694 + $0x30] sm:$0xf]
          %v708 = vld [vmem:[%s694 + $0x34] sm:$0xf]
          %v709 = vld [vmem:[%s694 + $0x38] sm:$0xf]
          %v710 = vld [vmem:[%s694 + $0x3c] sm:$0xf]
          %v713 = vunpack.c.l.b16 %v690
          %v714 = vunpack.c.l.b16 %v691
          %v715 = vpack.c.b16 %v714, %v713
          %v733 = vunpack.c.l.b16 %v695
          %v734 = vunpack.c.l.b16 %v696
          %v735 = vunpack.c.l.b16 %v697
          %v736 = vunpack.c.l.b16 %v698
          %v737 = vunpack.c.l.b16 %v699
          %v738 = vunpack.c.l.b16 %v700
          %v739 = vunpack.c.l.b16 %v701
          %v740 = vunpack.c.l.b16 %v702
          %v741 = vunpack.c.l.b16 %v703
          %v742 = vunpack.c.l.b16 %v704
          %v743 = vunpack.c.l.b16 %v705
          %v744 = vunpack.c.l.b16 %v706
          %v745 = vunpack.c.l.b16 %v707
          %v746 = vunpack.c.l.b16 %v708
          %v747 = vunpack.c.l.b16 %v709
          %v748 = vunpack.c.l.b16 %v710
          %v749 = vpack.c.b16 %v734, %v733
          %v750 = vpack.c.b16 %v736, %v735
          %v751 = vpack.c.b16 %v738, %v737
          %v752 = vpack.c.b16 %v740, %v739
          %v753 = vpack.c.b16 %v742, %v741
          %v754 = vpack.c.b16 %v744, %v743
          %v755 = vpack.c.b16 %v746, %v745
          %v756 = vpack.c.b16 %v748, %v747
          %765 = vmatpush.bf16.msra.mxu0 %v756
          %766 = vmatpush.bf16.msra.mxu0 %v755
          %767 = vmatpush.bf16.msra.mxu0 %v754
          %768 = vmatpush.bf16.msra.mxu0 %v753
          %769 = vmatpush.bf16.msra.mxu0 %v752
          %770 = vmatpush.bf16.msra.mxu0 %v751
          %771 = vmatpush.bf16.msra.mxu0 %v750
          %772 = vmatpush.bf16.msra.mxu0 %v749
          %773 = vmatmul.bf16.gmra.mxu0 %v715
          %v774 = vpop.f32.mrf.mxu0
          %v775 = vadd.f32 0.0, %v774
          %v776 = vpop.f32.mrf.mxu0
          %v777 = vadd.f32 0.0, %v776
          %778 = vdwg.mxu0
          %s779 = scalar_lea.vmem [#allocation2], %s692
          %v780 = vld [vmem:[%s779] sm:$0xff]
          %v781 = vld [vmem:[%s779 + $0x8] sm:$0xff]
          %v782 = vadd.f32 %v780, %v775
          %v783 = vadd.f32 %v781, %v777
          %vm784 = vcmask 72704
          %785 = vst.msk [vmem:[%s779] sm:$0xff] %vm784, %v782
          %786 = vst.msk [vmem:[%s779 + $0x8] sm:$0xff] %vm784, %v783
        $region94: #{tpu_custom_call.1} parent=76 // loop_footer
          %s681 = sadd.s32 1, %s677
        $region95: #{tpu_custom_call.1} parent=76 // loop_footer_branch
          %676 = sbr.rel target = $region91
        $region96: #{tpu_custom_call.1} parent=76 // loop_exit
          _
        %p787 = scmp.eq.s32.totalorder %s27, 1
        // Predicated region
        $region97: #{tpu_custom_call.1} parent=76 // pred_check
          %p788 = pneg %p787
        $region98: #{tpu_custom_call.1} parent=76 // pred_check_branch
          %790 = sbr.rel (%p788) target = $region100
        $region99: #{tpu_custom_call.1} parent=76 // pred_region
          %v791 = vld [vmem:[#allocation2] sm:$0xff]
          %v792 = vld [vmem:[#allocation2 + $0x8] sm:$0xff]
          %v793 = vadd.f32 %v791, 1e-05
          %v794 = vadd.f32 %v792, 1e-05
          %v795 = vrcp.pop %v793
          %v796 = vrcp.pop %v794
          %798 = vset.pattern.permute.xlu0 8
          %799 = vperm.xlu0 %798, %v795
          %v800 = vpop.permute.xlu0 %799
          %803 = vset.pattern.permute.xlu0 8
          %804 = vperm.xlu0 %803, %v796
          %v805 = vpop.permute.xlu0 %804
          %v807 = vmul.f32 %v791, %v800
          %v808 = vmul.f32 %v792, %v805
          %v809 = vpack.c.bf16 %v808, %v807
          %v810 = vld [vmem:[%s4] sm:$0xf]
          %s811 = scalar_lea.vmem [#allocation2], 16
          %v812 = vld [vmem:[%s811] sm:$0xff]
          %v813 = vld [vmem:[%s811 + $0x8] sm:$0xff]
          %v814 = vadd.f32 %v812, 1e-05
          %v815 = vadd.f32 %v813, 1e-05
          %v816 = vrcp.pop %v814
          %v817 = vrcp.pop %v815
          %819 = vset.pattern.permute.xlu0 8
          %820 = vperm.xlu0 %819, %v816
          %v821 = vpop.permute.xlu0 %820
          %824 = vset.pattern.permute.xlu0 8
          %825 = vperm.xlu0 %824, %v817
          %v826 = vpop.permute.xlu0 %825
          %v828 = vmul.f32 %v812, %v821
          %v829 = vmul.f32 %v813, %v826
          %v830 = vpack.c.bf16 %v829, %v828
          %s831 = scalar_lea.vmem %s4, 4
          %v832 = vld [vmem:[%s831] sm:$0xf]
          %v834 = vsel %vm644, %v830, 0
          %vm836 = vcmask 1043456
          %v838 = vsel %vm836, %v832, 0
          %840 = vmatpush.bf16.msra.mxu0 0
          %841 = vmatpush.bf16.msra.mxu0 0
          %842 = vmatpush.bf16.msra.mxu0 0
          %843 = vmatpush.bf16.msra.mxu0 0
          %844 = vmatpush.bf16.msra.mxu0 0
          %845 = vmatpush.bf16.msra.mxu0 0
          %846 = vmatpush.bf16.msra.mxu0 0
          %847 = vmatpush.bf16.msra.mxu0 %v838
          %848 = vmatmul.bf16.gmra.mxu0 %v834
          %v849 = vpop.f32.mrf.mxu0
          %v850 = vadd.f32 0.0, %v849
          %v851 = vpop.f32.mrf.mxu0
          %v852 = vadd.f32 0.0, %v851
          %853 = vdwg.mxu0
          %v855 = vsel %vm644, %v809, 0
          %v858 = vsel %vm836, %v810, 0
          %860 = vmatpush.bf16.msra.mxu0 0
          %861 = vmatpush.bf16.msra.mxu0 0
          %862 = vmatpush.bf16.msra.mxu0 0
          %863 = vmatpush.bf16.msra.mxu0 0
          %864 = vmatpush.bf16.msra.mxu0 0
          %865 = vmatpush.bf16.msra.mxu0 0
          %866 = vmatpush.bf16.msra.mxu0 0
          %867 = vmatpush.bf16.msra.mxu0 %v858
          %868 = vmatmul.bf16.gmra.mxu0 %v855
          %v869 = vpop.f32.mrf.mxu0
          %v870 = vadd.f32 %v850, %v869
          %v871 = vpop.f32.mrf.mxu0
          %v872 = vadd.f32 %v852, %v871
          %873 = vdwg.mxu0
          %s874 = scalar_lea.vmem [#allocation2], 32
          %v875 = vld [vmem:[%s874] sm:$0xff]
          %v876 = vld [vmem:[%s874 + $0x8] sm:$0xff]
          %v877 = vadd.f32 %v875, 1e-05
          %v878 = vadd.f32 %v876, 1e-05
          %v879 = vrcp.pop %v877
          %v880 = vrcp.pop %v878
          %882 = vset.pattern.permute.xlu0 8
          %883 = vperm.xlu0 %882, %v879
          %v884 = vpop.permute.xlu0 %883
          %887 = vset.pattern.permute.xlu0 8
          %888 = vperm.xlu0 %887, %v880
          %v889 = vpop.permute.xlu0 %888
          %v891 = vmul.f32 %v875, %v884
          %v892 = vmul.f32 %v876, %v889
          %v893 = vpack.c.bf16 %v892, %v891
          %s894 = scalar_lea.vmem %s4, 8
          %v895 = vld [vmem:[%s894] sm:$0xf]
          %v897 = vsel %vm644, %v893, 0
          %v900 = vsel %vm836, %v895, 0
          %902 = vmatpush.bf16.msra.mxu0 0
          %903 = vmatpush.bf16.msra.mxu0 0
          %904 = vmatpush.bf16.msra.mxu0 0
          %905 = vmatpush.bf16.msra.mxu0 0
          %906 = vmatpush.bf16.msra.mxu0 0
          %907 = vmatpush.bf16.msra.mxu0 0
          %908 = vmatpush.bf16.msra.mxu0 0
          %909 = vmatpush.bf16.msra.mxu0 %v900
          %910 = vmatmul.bf16.gmra.mxu0 %v897
          %v911 = vpop.f32.mrf.mxu0
          %v912 = vadd.f32 0.0, %v911
          %v913 = vpop.f32.mrf.mxu0
          %v914 = vadd.f32 0.0, %v913
          %915 = vdwg.mxu0
          %v916 = vadd.f32 %v870, %v912
          %v917 = vadd.f32 %v872, %v914
          %s918 = scalar_lea.vmem [#allocation2], 48
          %v919 = vld [vmem:[%s918] sm:$0xff]
          %v920 = vld [vmem:[%s918 + $0x8] sm:$0xff]
          %v921 = vadd.f32 %v919, 1e-05
          %v922 = vadd.f32 %v920, 1e-05
          %v923 = vrcp.pop %v921
          %v924 = vrcp.pop %v922
          %926 = vset.pattern.permute.xlu0 8
          %927 = vperm.xlu0 %926, %v923
          %v928 = vpop.permute.xlu0 %927
          %931 = vset.pattern.permute.xlu0 8
          %932 = vperm.xlu0 %931, %v924
          %v933 = vpop.permute.xlu0 %932
          %v935 = vmul.f32 %v919, %v928
          %v936 = vmul.f32 %v920, %v933
          %v937 = vpack.c.bf16 %v936, %v935
          %s938 = scalar_lea.vmem %s4, 12
          %v939 = vld [vmem:[%s938] sm:$0xf]
          %v941 = vsel %vm644, %v937, 0
          %v944 = vsel %vm836, %v939, 0
          %946 = vmatpush.bf16.msra.mxu0 0
          %947 = vmatpush.bf16.msra.mxu0 0
          %948 = vmatpush.bf16.msra.mxu0 0
          %949 = vmatpush.bf16.msra.mxu0 0
          %950 = vmatpush.bf16.msra.mxu0 0
          %951 = vmatpush.bf16.msra.mxu0 0
          %952 = vmatpush.bf16.msra.mxu0 0
          %953 = vmatpush.bf16.msra.mxu0 %v944
          %954 = vmatmul.bf16.gmra.mxu0 %v941
          %v955 = vpop.f32.mrf.mxu0
          %v956 = vadd.f32 0.0, %v955
          %v957 = vpop.f32.mrf.mxu0
          %v958 = vadd.f32 0.0, %v957
          %959 = vdwg.mxu0
          %v960 = vadd.f32 %v916, %v956
          %v961 = vadd.f32 %v917, %v958
          %v962 = vpack.c.bf16 %v960, %v960
          %v963 = vpack.c.bf16 %v961, %v961
          %964 = vst [vmem:[%s606] sm:$0xf] %v962
          %965 = vst [vmem:[%s606 + $0x4] sm:$0xf] %v963
        $region100: #{tpu_custom_call.1} parent=76 // pred_fallthru
          _
        %s966 = sand.u32 %s175, 1
        %s967 = scalar_lea.sflag [#allocation4], %s966
        %s968 = sand.u32 %s175, 1
        %s969 = smul.addr %s968, 8
        %s970 = scalar_lea.vmem [#allocation7], %s969
        // Predicated region
        $region101: #{tpu_custom_call.1} parent=76 // pred_check
          %p971 = pneg %p185
        $region102: #{tpu_custom_call.1} parent=76 // pred_check_branch
          %973 = sbr.rel (%p971) target = $region104
        $region103: #{tpu_custom_call.1} parent=76 // pred_region
          %s974 = smul.u32 2, %s26
          %976 = vsyncadd %s967, 0
          %s977 = smul.addr %s25, 4
          %s978 = sadd.s32 %s974, %s977
          %s979 = smul.addr %s978, 4
          %s980 = scalar_lea.hbm %s5, %s979
          %s981 = sshll.u32 %s970, 4
          %s982 = int_to_ptr.vmem [resolvable:$true] %s981
          %s983 = sshll.u32 %s980, 4
          %s984 = int_to_ptr.hbm [resolvable:$true] %s983
          %989 = dma.vmem_to_hbm [thread:$0]  %s982, 128, %s984, %s967, 64, 64, 4
        $region104: #{tpu_custom_call.1} parent=76 // pred_fallthru
          _
      $region77: #{tpu_custom_call.1} parent=5 // pred_fallthru
        _
      %p990 = scmp.le.s32.totalorder 2, %s15
      // Predicated region
      $region105: #{tpu_custom_call.1} parent=5 // pred_check
        %p991 = pneg %p990
      $region106: #{tpu_custom_call.1} parent=5 // pred_check_branch
        %993 = sbr.rel (%p991) target = $region108
      $region107: #{tpu_custom_call.1} parent=5 // pred_region
        %s994 = ssub.s32 %s15, 2
        // Predicated region
        $region109: #{tpu_custom_call.1} parent=107 // pred_check
          %p995 = pneg %p191
        $region110: #{tpu_custom_call.1} parent=107 // pred_check_branch
          %997 = sbr.rel (%p995) target = $region112
        $region111: #{tpu_custom_call.1} parent=107 // pred_region
          %s998 = sand.u32 %s176, 1
          %s999 = scalar_lea.sflag [#allocation4], %s998
          %s1000 = sand.u32 %s176, 1
          %s1001 = smul.addr %s1000, 8
          %s1002 = scalar_lea.vmem [#allocation7], %s1001
          %1004 = dma.done %s999, 128
        $region112: #{tpu_custom_call.1} parent=107 // pred_fallthru
          _
      $region108: #{tpu_custom_call.1} parent=5 // pred_fallthru
        _
    $region6: #{tpu_custom_call.1} parent=1 // loop_footer
      %s19 = sadd.s32 1, %s15
    $region7: #{tpu_custom_call.1} parent=1 // loop_footer_branch
      %14 = sbr.rel target = $region3
    $region8: #{tpu_custom_call.1} parent=1 // loop_exit
      _
    %1005 = vsyncpa [#allocation4], 1
    %s1006 = scalar_lea.sflag [#allocation4], 1
    %1007 = vsyncpa %s1006, 1
    %1008 = vsyncpa [#allocation5], 1
    %s1009 = scalar_lea.sflag [#allocation5], 1
    %1010 = vsyncpa %s1009, 1

</llo_original>
